<compile_context>
chip_gen: v7x
topology: tpu7x:2x2x1
jax: 0.10.0
libtpu: 0.0.40
codegen_flags: <defaults>
</compile_context>

<pallas_src>
import functools
import math

import numpy as np
import jax
import jax.numpy as jnp
from jax import lax
from jax.experimental import pallas as pl
from jax.experimental.pallas import tpu as pltpu

_U_MAX = 0.9998                                   # = 2*0.9999 - 1 (clamp folded through affine)
_W_MAX = -math.log1p(-_U_MAX * _U_MAX)            # max of w = -log(1-u^2), ~7.824
_SQRT2 = math.sqrt(2.0)

_TARGET_BLOCK_ELEMS = 512 * 1024                  # 2 MiB f32 / block; 4 dbl-buffered bufs = 8 MiB
_MIN_BLOCKS = 4                                   # >= 2 (v7x TensorCores) x 2 for pipelining
_MAX_LANE = 16384


# ----------------------------------------------------------------------------
# Host-side (trace-time) fit of erfinv(u)/u over the clamped range.
# ----------------------------------------------------------------------------
def _erfinv_host(x):
    """Double-precision erfinv on (0,1): Giles f32 seed + 3 Newton steps (host only)."""
    w = -math.log((1.0 - x) * (1.0 + x))
    if w < 5.0:
        ww = w - 2.5
        p = 2.81022636e-08
        for c in (3.43273939e-07, -3.5233877e-06, -4.39150654e-06, 0.00021858087,
                  -0.00125372503, -0.00417768164, 0.246640727, 1.50140941):
            p = p * ww + c
    else:
        ww = math.sqrt(w) - 3.0
        p = -0.000200214257
        for c in (0.000100950558, 0.00134934322, -0.00367342844, 0.00573950773,
                  -0.0076224613, 0.00943887047, 1.00167406, 2.83297682):
            p = p * ww + c
    t = p * x
    for _ in range(3):  # Newton: erf is stdlib, erf'(t) = 2/sqrt(pi) e^{-t^2}
        t = t - (math.erf(t) - x) * (math.sqrt(math.pi) / 2.0) * math.exp(t * t)
    return t


@functools.lru_cache(maxsize=None)
def _erfinv_over_u_coeffs():
    """Single polynomial q(t) ~ erfinv(u)/u, t = (w - c)/h in [-1,1], w = -log(1-u^2).

    The clamp guarantees w in [0, _W_MAX], so one Horner chain covers the whole
    domain (no sqrt branch, no select).  Degree is the smallest in [6, 14] whose
    max abs error on a dense validation grid is < 2e-5 (orders of magnitude below
    the module's needs); the fit itself is a one-time host computation.
    """
    c = 0.5 * _W_MAX
    h = 0.5 * _W_MAX

    def f_of_w(w):
        if w < 1e-12:
            return math.sqrt(math.pi) / 2.0            # lim_{u->0} erfinv(u)/u
        u = math.sqrt(-math.expm1(-w))
        return _erfinv_host(u) / u

    n = 512
    ts = np.cos((2 * np.arange(n) + 1) * np.pi / (2 * n))   # Chebyshev-spread nodes
    ys = np.array([f_of_w((t + 1.0) * h) for t in ts])

    tval = np.linspace(-1.0, 1.0, 4001)
    yval = np.array([f_of_w((t + 1.0) * h) for t in tval])

    coef = None
    for deg in range(6, 15):
        ch = np.polynomial.chebyshev.chebfit(ts, ys, deg)
        coef = np.polynomial.chebyshev.cheb2poly(ch)         # ascending monomial in t
        err = float(np.max(np.abs(np.polynomial.polynomial.polyval(tval, coef) - yval)))
        if err < 2e-5:
            break
    horner = tuple(float(v) for v in coef[::-1])             # highest-degree first
    return horner, float(c), float(h)


# ----------------------------------------------------------------------------
# Kernel
# ----------------------------------------------------------------------------
def _to_normal_kernel(x_ref, o_ref, *, inv_latent_max, coeffs, w_center, neg_inv_w_half):
    x = x_ref[...].astype(jnp.float32)
    # Folded affine + clamp: clamp(x/(2L)+0.5, 1e-4, 1-1e-4)  <=>  u = clip(x/L, +-0.9998)
    u = jnp.clip(x * jnp.float32(inv_latent_max),
                 jnp.float32(-_U_MAX), jnp.float32(_U_MAX))
    # w = -log(1-u^2) in [0, _W_MAX]; fold the negation into the fit variable:
    #   t = (w - c)/h = (log(1-u^2) + c) * (-1/h)
    s = jnp.float32(1.0) - u * u                         # >= 1 - _U_MAX^2 > 0
    t = (jnp.log(s) + jnp.float32(w_center)) * jnp.float32(neg_inv_w_half)
    # Horner; coefficients already include scale*sqrt(2).
    p = jnp.float32(coeffs[0])
    for cc in coeffs[1:]:
        p = p * t + jnp.float32(cc)
    o_ref[...] = (p * u).astype(o_ref.dtype)


def _run_tiles(x2, *, inv_latent_max, coeffs, w_center, neg_inv_w_half):
    rows, lane = x2.shape                                # lane is a multiple of 128
    if rows <= 8:
        tm = rows                                        # block == full extent (always legal)
    else:
        max_rows = max(8, (_TARGET_BLOCK_ELEMS // lane) // 8 * 8)   # ~2 MiB f32 blocks
        want = -(-rows // _MIN_BLOCKS)                   # aim for >= _MIN_BLOCKS grid steps (v7x)
        want = -(-want // 8) * 8                         # sublane-aligned
        tm = max(8, min(max_rows, want))
    grid = (pl.cdiv(rows, tm),)

    kernel = functools.partial(
        _to_normal_kernel, inv_latent_max=inv_latent_max, coeffs=coeffs,
        w_center=w_center, neg_inv_w_half=neg_inv_w_half)

    return pl.pallas_call(
        kernel,
        out_shape=jax.ShapeDtypeStruct(x2.shape, x2.dtype),
        grid=grid,
        in_specs=[pl.BlockSpec((tm, lane), lambda i: (i, 0))],
        out_specs=pl.BlockSpec((tm, lane), lambda i: (i, 0)),
        compiler_params=pltpu.CompilerParams(
            # TODO(synk): profile on v7x to confirm "parallel" shards this axis across
            # both TensorCores; switch to pltpu.CORE_PARALLEL / core_map if it doesn't.
            dimension_semantics=("parallel",),
        ),
    )(x2)


def _pick_lane_from_shape(shape):
    """Smallest trailing-dims product that is a multiple of 128 (lane-dense, no padding)."""
    t = 1
    for d in reversed(shape):
        t *= d
        if t % 128 == 0 and t <= _MAX_LANE:
            return t
    return None


def to_normal(x, scale, latent_max):
    """Pallas implementation of walloc.ToNormal.forward (elementwise)."""
    orig_shape = x.shape
    total = x.size
    inv_latent_max = 1.0 / float(latent_max)
    out_scale = float(scale) * _SQRT2

    base, w_c, w_h = _erfinv_over_u_coeffs()
    coeffs = tuple(v * out_scale for v in base)          # fold scale*sqrt(2) into the poly
    kw = dict(inv_latent_max=inv_latent_max, coeffs=coeffs,
              w_center=w_c, neg_inv_w_half=-1.0 / w_h)

    # Preferred: lane-dense 2-D view from the original dims (no jnp.pad / output slice).
    lane = _pick_lane_from_shape(orig_shape)
    if lane is None and total % 128 == 0:
        lane = max(l for l in (512, 384, 256, 128) if total % l == 0)
    if lane is not None:
        y2 = _run_tiles(x.reshape(total // lane, lane), **kw)
        return y2.reshape(orig_shape)

    # Truly ragged flat size: kernel on the bulk, tiny jnp expression on the tail
    # (avoids the 2+ extra full-tensor HBM passes of pad + slice).
    flat = x.reshape(-1)
    lane = 512 if total >= 512 else 128
    nbulk = (total // lane) * lane
    pieces = []
    if nbulk:
        yb = _run_tiles(flat[:nbulk].reshape(nbulk // lane, lane), **kw)
        pieces.append(yb.reshape(-1))
    rem = flat[nbulk:]
    u = jnp.clip(rem.astype(jnp.float32) * jnp.float32(inv_latent_max),
                 jnp.float32(-_U_MAX), jnp.float32(_U_MAX))
    pieces.append((jnp.float32(out_scale) * lax.erf_inv(u)).astype(x.dtype))
    return jnp.concatenate(pieces).reshape(orig_shape)


def _to_normal_ref(x, scale, latent_max):
    """Pure-JAX reference (mirrors the PyTorch module exactly)."""
    p = x / (2.0 * latent_max) + 0.5
    p = jnp.clip(p, 0.0001, 0.9999)
    return scale * jax.scipy.stats.norm.ppf(p)


if __name__ == "__main__":
    scale = 0.25
    latent_max = 5.0

    # Case 1: typical latent tensor; trailing dims give a lane-dense (8, 256) view.
    x = jax.random.normal(jax.random.PRNGKey(0), (2, 4, 16, 16), jnp.float32) * latent_max
    y = jax.block_until_ready(to_normal(x, scale, latent_max))
    y_ref = _to_normal_ref(x, scale, latent_max)
    assert y.shape == x.shape and y.dtype == x.dtype
    assert jnp.max(jnp.abs(y - y_ref)) < 1e-3, "mismatch vs reference"

    # Case 2: ragged flat size (2040 elements) exercises the bulk-kernel + jnp-tail path.
    x2 = jax.random.normal(jax.random.PRNGKey(1), (2, 4, 15, 17), jnp.float32) * latent_max
    y2 = jax.block_until_ready(to_normal(x2, scale, latent_max))
    y2_ref = _to_normal_ref(x2, scale, latent_max)
    assert y2.shape == x2.shape and y2.dtype == x2.dtype
    assert jnp.max(jnp.abs(y2 - y2_ref)) < 1e-3, "mismatch vs reference (ragged)"

    # Case 3: exact zeros and beyond-clamp values (w = 0 and w = _W_MAX endpoints).
    x3 = jnp.concatenate([jnp.zeros((1, 1, 4, 128), jnp.float32),
                          jnp.full((1, 1, 4, 128), 50.0, jnp.float32)], axis=2)
    y3 = jax.block_until_ready(to_normal(x3, scale, latent_max))
    y3_ref = _to_normal_ref(x3, scale, latent_max)
    assert jnp.max(jnp.abs(y3 - y3_ref)) < 1e-3, "mismatch vs reference (endpoints)"

    print("KERNEL_OK")
</pallas_src>

<mosaic_0001>
module attributes {stable_mosaic.version = 11 : i64} {
  func.func @_to_normal_kernel(%arg0: i32, %arg1: memref<8x256xf32, #tpu.memory_space<vmem>>, %arg2: memref<8x256xf32, #tpu.memory_space<vmem>>) attributes {dimension_semantics = [#tpu.dimension_semantics<parallel>], iteration_bounds = array<i64: 1>, scalar_prefetch = 0 : i64, scratch_operands = 0 : i64, tpu.core_type = #tpu.core_type<tc>, window_params = [{transform_indices = @transform_0, window_bounds = array<i64: 8, 256>}, {transform_indices = @transform_1, window_bounds = array<i64: 8, 256>}]} {
    %c0 = arith.constant 0 : index
    %c0_0 = arith.constant 0 : index
    %0 = vector.load %arg1[%c0, %c0_0] : memref<8x256xf32, #tpu.memory_space<vmem>>, vector<8x256xf32>
    %cst = arith.constant 2.000000e-01 : f32
    %1 = vector.broadcast %cst : f32 to vector<8x256xf32>
    %2 = arith.mulf %0, %1 : vector<8x256xf32>
    %cst_1 = arith.constant -9.998000e-01 : f32
    %cst_2 = arith.constant 9.998000e-01 : f32
    %3 = vector.broadcast %cst_1 : f32 to vector<8x256xf32>
    %4 = arith.maximumf %3, %2 : vector<8x256xf32>
    %5 = vector.broadcast %cst_2 : f32 to vector<8x256xf32>
    %6 = arith.minimumf %5, %4 : vector<8x256xf32>
    %7 = arith.mulf %6, %6 : vector<8x256xf32>
    %cst_3 = arith.constant 1.000000e+00 : f32
    %8 = vector.broadcast %cst_3 : f32 to vector<8x256xf32>
    %9 = arith.subf %8, %7 : vector<8x256xf32>
    %10 = math.log %9 : vector<8x256xf32>
    %cst_4 = arith.constant 3.9120729 : f32
    %11 = vector.broadcast %cst_4 : f32 to vector<8x256xf32>
    %12 = arith.addf %10, %11 : vector<8x256xf32>
    %cst_5 = arith.constant -0.25561896 : f32
    %13 = vector.broadcast %cst_5 : f32 to vector<8x256xf32>
    %14 = arith.mulf %12, %13 : vector<8x256xf32>
    %cst_6 = arith.constant 0.00101999682 : f32
    %15 = vector.broadcast %cst_6 : f32 to vector<8x256xf32>
    %16 = arith.mulf %15, %14 : vector<8x256xf32>
    %cst_7 = arith.constant -5.45315444E-4 : f32
    %17 = vector.broadcast %cst_7 : f32 to vector<8x256xf32>
    %18 = arith.addf %16, %17 : vector<8x256xf32>
    %19 = arith.mulf %18, %14 : vector<8x256xf32>
    %cst_8 = arith.constant -0.00506335497 : f32
    %20 = vector.broadcast %cst_8 : f32 to vector<8x256xf32>
    %21 = arith.addf %19, %20 : vector<8x256xf32>
    %22 = arith.mulf %21, %14 : vector<8x256xf32>
    %cst_9 = arith.constant 0.0109763779 : f32
    %23 = vector.broadcast %cst_9 : f32 to vector<8x256xf32>
    %24 = arith.addf %22, %23 : vector<8x256xf32>
    %25 = arith.mulf %24, %14 : vector<8x256xf32>
    %cst_10 = arith.constant -0.00524495216 : f32
    %26 = vector.broadcast %cst_10 : f32 to vector<8x256xf32>
    %27 = arith.addf %25, %26 : vector<8x256xf32>
    %28 = arith.mulf %27, %14 : vector<8x256xf32>
    %cst_11 = arith.constant -0.0388563313 : f32
    %29 = vector.broadcast %cst_11 : f32 to vector<8x256xf32>
    %30 = arith.addf %28, %29 : vector<8x256xf32>
    %31 = arith.mulf %30, %14 : vector<8x256xf32>
    %cst_12 = arith.constant 0.317594349 : f32
    %32 = vector.broadcast %cst_12 : f32 to vector<8x256xf32>
    %33 = arith.addf %31, %32 : vector<8x256xf32>
    %34 = arith.mulf %33, %14 : vector<8x256xf32>
    %cst_13 = arith.constant 0.650062323 : f32
    %35 = vector.broadcast %cst_13 : f32 to vector<8x256xf32>
    %36 = arith.addf %34, %35 : vector<8x256xf32>
    %37 = arith.mulf %36, %6 : vector<8x256xf32>
    %c0_14 = arith.constant 0 : index
    %c0_15 = arith.constant 0 : index
    %38 = vector.load %arg2[%c0_14, %c0_15] : memref<8x256xf32, #tpu.memory_space<vmem>>, vector<8x256xf32>
    tpu.vector_store %arg2[%c0_14, %c0_15], %37 {strides = array<i32>} : memref<8x256xf32, #tpu.memory_space<vmem>>, vector<8x256xf32>,
    return
  }
  func.func @transform_0(%arg0: i32) -> (i32, i32) {
    %c0_i32 = arith.constant 0 : i32
    %c0_i32_0 = arith.constant 0 : i32
    return %arg0, %c0_i32 : i32, i32
  }
  func.func @transform_1(%arg0: i32) -> (i32, i32) {
    %c0_i32 = arith.constant 0 : i32
    %c0_i32_0 = arith.constant 0 : i32
    return %arg0, %c0_i32 : i32, i32
  }
}

</mosaic_0001>

<llo_original>
// kernel: tpu_custom_call.1
$region0: #{tpu_custom_call.1}
  #allocation0 [shape = 'u32[]', space=smem, size = 0x4, offset = 0x4, fixed_abs, tag = 'smem constant byte address 0x4 - core index']
  #allocation1 [shape = 'u32[144,128]{1,0:T(1,128)}', space=vmem, size = 0x12000, scoped, tag = 'internal scratch']
  %s0 = inlined_call_operand.hbm [shape: f32[8,256], index: 0, kind: input, shape index: {}]
  %s1 = inlined_call_operand.hbm [shape: f32[8,256], index: 1, kind: output, shape index: {}]
  %s2 = sld [smem:[#allocation0]]
  $region18: #{tpu_custom_call.1} parent=0
    _
  %s4 = ssub.s32 1, %s2
  %s5 = scalar_select 0, %s4, %s2
  $region1: #{tpu_custom_call.1} parent=0
    #allocation2 [shape = 'u8[8192]{0}', space=vmem, size = 0x2000, scoped, tag = 'input window, operand 0, single buffered']
    #allocation3 [shape = 's32[1]{0}', space=sflag, size = 0x4, scoped, tag = 'scoped memory for tpu_custom_call.1']
    #allocation4 [shape = 's32[1]{0}', space=sflag, size = 0x4, scoped, tag = 'scoped memory for tpu_custom_call.1']
    #allocation5 [shape = 'u8[8192]{0}', space=vmem, size = 0x2000, scoped, tag = 'output window, operand 0, single buffered']
    %6 = vsyncpa [#allocation3], 0
    %7 = vsyncpa [#allocation4], 0
    // Predicated region
    $region2: #{tpu_custom_call.1} parent=1 // pred_check
      _
    $region3: #{tpu_custom_call.1} parent=1 // pred_check_branch
      %9 = sbr.rel (0) target = $region5
    $region4: #{tpu_custom_call.1} parent=1 // pred_region
      %s11 = ssub.s32 256, 256
      %12 = vsyncadd [#allocation3], %s11
      %s14 = sshll.u32 [#allocation2], 4
      %s15 = int_to_ptr.vmem [resolvable:$true] %s14
      %17 = dma.hbm_to_vmem [thread:$0]  %s0, 256, %s15, [#allocation3]
    $region5: #{tpu_custom_call.1} parent=1 // pred_fallthru
      _
    // Predicated region
    $region6: #{tpu_custom_call.1} parent=1 // pred_check
      _
    $region7: #{tpu_custom_call.1} parent=1 // pred_check_branch
      %19 = sbr.rel (0) target = $region9
    $region8: #{tpu_custom_call.1} parent=1 // pred_region
      %20 = dma.done [#allocation3], 256
    $region9: #{tpu_custom_call.1} parent=1 // pred_fallthru
      _
    %v21 = vld [vmem:[#allocation2] sm:$0xff]
    %v22 = vld [vmem:[#allocation2 + $0x8] sm:$0xff]
    %v23 = vmul.f32 %v21, 0.2
    %v24 = vmul.f32 %v22, 0.2
    %v25 = vmax.f32 %v23, -0.9998
    %v26 = vmax.f32 %v24, -0.9998
    %v27 = vmin.f32 %v25, 0.9998
    %v28 = vmin.f32 %v26, 0.9998
    %v29 = vmul.f32 %v27, %v27
    %v30 = vmul.f32 %v28, %v28
    %v31 = vsub.f32 1.0, %v29
    %v32 = vsub.f32 1.0, %v30
    %v33 = vlog2.pop %v31
    %v34 = vmul.f32 %v33, 0.6931472
    %v35 = vlog2.pop %v32
    %v36 = vmul.f32 %v35, 0.6931472
    %v37 = vadd.f32 %v34, 3.912073
    %v38 = vadd.f32 %v36, 3.912073
    %v39 = vmul.f32 %v37, -0.25561896
    %v40 = vmul.f32 %v38, -0.25561896
    %v41 = vmul.f32 %v39, 0.0010199968
    %v42 = vmul.f32 %v40, 0.0010199968
    %v43 = vadd.f32 %v41, -0.00054531544
    %v44 = vadd.f32 %v42, -0.00054531544
    %v45 = vmul.f32 %v43, %v39
    %v46 = vmul.f32 %v44, %v40
    %v47 = vadd.f32 %v45, -0.005063355
    %v48 = vadd.f32 %v46, -0.005063355
    %v49 = vmul.f32 %v47, %v39
    %v50 = vmul.f32 %v48, %v40
    %v51 = vadd.f32 %v49, 0.010976378
    %v52 = vadd.f32 %v50, 0.010976378
    %v53 = vmul.f32 %v51, %v39
    %v54 = vmul.f32 %v52, %v40
    %v55 = vadd.f32 %v53, -0.005244952
    %v56 = vadd.f32 %v54, -0.005244952
    %v57 = vmul.f32 %v55, %v39
    %v58 = vmul.f32 %v56, %v40
    %v59 = vadd.f32 %v57, -0.03885633
    %v60 = vadd.f32 %v58, -0.03885633
    %v61 = vmul.f32 %v59, %v39
    %v62 = vmul.f32 %v60, %v40
    %v63 = vadd.f32 %v61, 0.31759435
    %v64 = vadd.f32 %v62, 0.31759435
    %v65 = vmul.f32 %v63, %v39
    %v66 = vmul.f32 %v64, %v40
    %v67 = vadd.f32 %v65, 0.6500623
    %v68 = vadd.f32 %v66, 0.6500623
    %v69 = vmul.f32 %v67, %v27
    %v70 = vmul.f32 %v68, %v28
    %71 = vst [vmem:[#allocation5] sm:$0xff] %v69
    %72 = vst [vmem:[#allocation5 + $0x8] sm:$0xff] %v70
    // Predicated region
    $region10: #{tpu_custom_call.1} parent=1 // pred_check
      _
    $region11: #{tpu_custom_call.1} parent=1 // pred_check_branch
      %74 = sbr.rel (0) target = $region13
    $region12: #{tpu_custom_call.1} parent=1 // pred_region
      %s76 = ssub.s32 256, 256
      %77 = vsyncadd [#allocation4], %s76
      %s79 = sshll.u32 [#allocation5], 4
      %s80 = int_to_ptr.vmem [resolvable:$true] %s79
      %82 = dma.vmem_to_hbm [thread:$0]  %s80, 256, %s1, [#allocation4]
    $region13: #{tpu_custom_call.1} parent=1 // pred_fallthru
      _
    // Predicated region
    $region14: #{tpu_custom_call.1} parent=1 // pred_check
      _
    $region15: #{tpu_custom_call.1} parent=1 // pred_check_branch
      %84 = sbr.rel (0) target = $region17
    $region16: #{tpu_custom_call.1} parent=1 // pred_region
      %85 = dma.done [#allocation4], 256
    $region17: #{tpu_custom_call.1} parent=1 // pred_fallthru
      _
    %86 = vsyncpa [#allocation3], 1
    %87 = vsyncpa [#allocation4], 1

</llo_original>
